<compile_context>
chip_gen: v7x
topology: tpu7x:2x2x1
jax: 0.10.0
libtpu: 0.0.40
codegen_flags: <defaults>
</compile_context>

<pallas_src>
import jax
import jax.numpy as jnp
from jax.experimental import pallas as pl
from jax.experimental.pallas import tpu as pltpu

_LANES = 128


def _final_conv_kernel(x_ref, w_ref, b_ref, o_ref):
    """Fused ReLU -> pointwise ConvTranspose3d(k=1) -> bias -> tanh.

    x_ref: (n_tile, Cin, row_tile, 128)  VMEM, channel-major, spatial in (sublane, lane)
    w_ref: (Cout, Cin)                   SMEM scalars; w[co, ci] = weight[ci, co, 0, 0, 0]
    b_ref: (Cout,)                       SMEM scalars
    o_ref: (n_tile, Cout, row_tile, 128) VMEM
    """
    cout, cin = w_ref.shape
    # One load of the whole block; upcast keeps the VPU path f32 even if a caller
    # ever feeds bf16 (no bf16 VALU on v5e).  ReLU each input channel exactly once.
    x = x_ref[...].astype(jnp.float32)
    relus = [jnp.maximum(x[:, ci], 0.0) for ci in range(cin)]
    outs = []
    for co in range(cout):
        acc = w_ref[co, 0] * relus[0]                 # SMEM scalar * dense vregs (VPU)
        for ci in range(1, cin):
            acc = acc + w_ref[co, ci] * relus[ci]
        outs.append(jnp.tanh(acc + b_ref[co]))        # tanh -> EUP slot
    # Single lane-dense store of the whole output block.
    o_ref[...] = jnp.stack(outs, axis=1).astype(o_ref.dtype)


def final_conv(x, weight, bias, *, target_block_bytes=4 * 1024 * 1024):
    """JAX/Pallas equivalent of finalConv.forward(x).

    x:      (N, Cin, D, H, W) float32   (NCDHW, PyTorch convention)
    weight: (Cin, Cout, 1, 1, 1)        ConvTranspose3d weight
    bias:   (Cout,)
    returns (N, Cout, D, H, W) float32
    """
    N, Cin, D, H, W = x.shape
    Cout = weight.shape[1]
    S = D * H * W

    # ---- fold flattened spatial into a lane-dense (rows, 128) slab --------------
    R = pl.cdiv(S, _LANES)
    Sp = R * _LANES
    x3 = x.reshape(N, Cin, S)
    if Sp != S:
        # Only triggers when D*H*W is not a multiple of 128 (costs one extra copy).
        x3 = jnp.pad(x3, ((0, 0), (0, 0), (0, Sp - S)))
    x4 = x3.reshape(N, Cin, R, _LANES)                # pure view, no transpose

    # ---- pick block sizes --------------------------------------------------------
    itemsize = 4                                       # f32 in & out
    bytes_per_row = (Cin + Cout) * _LANES * itemsize   # HBM traffic per 128-voxel row
    # Cap per-step block so double-buffered VMEM stays well under v7x's 64 MiB.
    tgt = min(target_block_bytes, 20 * 1024 * 1024)

    row_tile = min(R, max(8, tgt // bytes_per_row))
    if row_tile < R:
        row_tile = max(8, (row_tile // 8) * 8)         # (8,128) tiling rule
    n_row_blocks = pl.cdiv(R, row_tile)                # partial last block is masked

    # When the per-sample volume is small, fatten the block across batch instead.
    per_sample_block = bytes_per_row * row_tile
    n_tile = max(1, min(N, tgt // per_sample_block))
    # Keep at least 2 grid steps so both v7x TensorCores are fed (when possible).
    if n_tile > 1 and pl.cdiv(N, n_tile) * n_row_blocks < 2:
        n_tile = max(1, N // 2)
    grid = (pl.cdiv(N, n_tile), n_row_blocks)

    block_bytes = n_tile * per_sample_block
    vmem_limit = int(min(48 * 1024 * 1024, max(2 * block_bytes + (4 << 20), 8 << 20)))

    w2 = jnp.transpose(weight.reshape(Cin, Cout))      # (Cout, Cin) scalars for SMEM
    b1 = bias.reshape(Cout)

    out = pl.pallas_call(
        _final_conv_kernel,
        out_shape=jax.ShapeDtypeStruct((N, Cout, R, _LANES), jnp.float32),
        grid=grid,
        in_specs=[
            pl.BlockSpec((n_tile, Cin, row_tile, _LANES), lambda n, r: (n, 0, r, 0)),
            pl.BlockSpec(memory_space=pltpu.MemorySpace.SMEM),   # (Cout, Cin) weights
            pl.BlockSpec(memory_space=pltpu.MemorySpace.SMEM),   # (Cout,) bias
        ],
        out_specs=pl.BlockSpec((n_tile, Cout, row_tile, _LANES), lambda n, r: (n, 0, r, 0)),
        compiler_params=pltpu.CompilerParams(
            dimension_semantics=("parallel", "parallel"),
            vmem_limit_bytes=vmem_limit,
        ),
    )(x4, w2, b1)

    out = out.reshape(N, Cout, Sp)
    if Sp != S:                                        # no extra HBM pass when aligned
        out = out[:, :, :S]
    return out.reshape(N, Cout, D, H, W)


def _reference(x, weight, bias):
    """Pure-JAX/XLA reference of the same forward pass (NCDHW)."""
    xr = jnp.maximum(x, 0.0)
    w2 = weight.reshape(weight.shape[0], weight.shape[1])      # (Cin, Cout)
    y = jnp.einsum('ncdhw,co->nodhw', xr, w2,
                   precision=jax.lax.Precision.HIGHEST)
    y = y + bias[None, :, None, None, None]
    return jnp.tanh(y)


if __name__ == "__main__":
    key = jax.random.PRNGKey(0)
    N, Cin, D, H, W = 2, 4, 16, 16, 16
    Cout = 1                          # outch defaults to 1 in the module

    k1, k2, k3 = jax.random.split(key, 3)
    x = jax.random.normal(k1, (N, Cin, D, H, W), jnp.float32)
    fan = float(Cin)                  # kernel_size=1 -> fan_in = Cin
    weight = jax.random.uniform(k2, (Cin, Cout, 1, 1, 1), jnp.float32, -1.0, 1.0) / jnp.sqrt(fan)
    bias = jax.random.uniform(k3, (Cout,), jnp.float32, -1.0, 1.0) / jnp.sqrt(fan)

    out = jax.block_until_ready(final_conv(x, weight, bias))
    ref = jax.block_until_ready(_reference(x, weight, bias))

    assert out.shape == (N, Cout, D, H, W), out.shape
    max_err = float(jnp.max(jnp.abs(out - ref)))
    assert max_err < 1e-3, f"mismatch vs reference: {max_err}"
    print("KERNEL_OK")
</pallas_src>

<mosaic_0001>
module attributes {stable_mosaic.version = 11 : i64} {
  func.func @_final_conv_kernel(%arg0: i32, %arg1: i32, %arg2: memref<1x4x32x128xf32, #tpu.memory_space<vmem>>, %arg3: memref<1x4xf32, #tpu.memory_space<smem>>, %arg4: memref<1xf32, #tpu.memory_space<smem>>, %arg5: memref<1x1x32x128xf32, #tpu.memory_space<vmem>>) attributes {dimension_semantics = [#tpu.dimension_semantics<parallel>, #tpu.dimension_semantics<parallel>], iteration_bounds = array<i64: 2, 1>, scalar_prefetch = 0 : i64, scratch_operands = 0 : i64, tpu.core_type = #tpu.core_type<tc>, window_params = [{transform_indices = @transform_0, window_bounds = array<i64: 1, 4, 32, 128>}, {transform_indices = @transform_1, window_bounds = array<i64: 1, 4>}, {transform_indices = @transform_2, window_bounds = array<i64: 1>}, {transform_indices = @transform_3, window_bounds = array<i64: 1, 1, 32, 128>}]} {
    %c0 = arith.constant 0 : index
    %c0_0 = arith.constant 0 : index
    %c0_1 = arith.constant 0 : index
    %c0_2 = arith.constant 0 : index
    %0 = vector.load %arg2[%c0, %c0_0, %c0_1, %c0_2] : memref<1x4x32x128xf32, #tpu.memory_space<vmem>>, vector<1x4x32x128xf32>
    %1 = vector.extract_strided_slice %0 {offsets = [0, 0, 0, 0], sizes = [1, 1, 32, 128], strides = [1, 1, 1, 1]} : vector<1x4x32x128xf32> to vector<1x1x32x128xf32>
    %2 = vector.shape_cast %1 : vector<1x1x32x128xf32> to vector<1x32x128xf32>
    %cst = arith.constant 0.000000e+00 : f32
    %3 = vector.broadcast %cst : f32 to vector<1x32x128xf32>
    %4 = arith.maximumf %2, %3 : vector<1x32x128xf32>
    %5 = vector.extract_strided_slice %0 {offsets = [0, 1, 0, 0], sizes = [1, 1, 32, 128], strides = [1, 1, 1, 1]} : vector<1x4x32x128xf32> to vector<1x1x32x128xf32>
    %6 = vector.shape_cast %5 : vector<1x1x32x128xf32> to vector<1x32x128xf32>
    %cst_3 = arith.constant 0.000000e+00 : f32
    %7 = vector.broadcast %cst_3 : f32 to vector<1x32x128xf32>
    %8 = arith.maximumf %6, %7 : vector<1x32x128xf32>
    %9 = vector.extract_strided_slice %0 {offsets = [0, 2, 0, 0], sizes = [1, 1, 32, 128], strides = [1, 1, 1, 1]} : vector<1x4x32x128xf32> to vector<1x1x32x128xf32>
    %10 = vector.shape_cast %9 : vector<1x1x32x128xf32> to vector<1x32x128xf32>
    %cst_4 = arith.constant 0.000000e+00 : f32
    %11 = vector.broadcast %cst_4 : f32 to vector<1x32x128xf32>
    %12 = arith.maximumf %10, %11 : vector<1x32x128xf32>
    %13 = vector.extract_strided_slice %0 {offsets = [0, 3, 0, 0], sizes = [1, 1, 32, 128], strides = [1, 1, 1, 1]} : vector<1x4x32x128xf32> to vector<1x1x32x128xf32>
    %14 = vector.shape_cast %13 : vector<1x1x32x128xf32> to vector<1x32x128xf32>
    %cst_5 = arith.constant 0.000000e+00 : f32
    %15 = vector.broadcast %cst_5 : f32 to vector<1x32x128xf32>
    %16 = arith.maximumf %14, %15 : vector<1x32x128xf32>
    %c0_6 = arith.constant 0 : index
    %c0_7 = arith.constant 0 : index
    %17 = memref.load %arg3[%c0_6, %c0_7] : memref<1x4xf32, #tpu.memory_space<smem>>
    %18 = vector.broadcast %17 : f32 to vector<1x32x128xf32>
    %19 = arith.mulf %18, %4 : vector<1x32x128xf32>
    %c0_8 = arith.constant 0 : index
    %c1 = arith.constant 1 : index
    %20 = memref.load %arg3[%c0_8, %c1] : memref<1x4xf32, #tpu.memory_space<smem>>
    %21 = vector.broadcast %20 : f32 to vector<1x32x128xf32>
    %22 = arith.mulf %21, %8 : vector<1x32x128xf32>
    %23 = arith.addf %19, %22 : vector<1x32x128xf32>
    %c0_9 = arith.constant 0 : index
    %c2 = arith.constant 2 : index
    %24 = memref.load %arg3[%c0_9, %c2] : memref<1x4xf32, #tpu.memory_space<smem>>
    %25 = vector.broadcast %24 : f32 to vector<1x32x128xf32>
    %26 = arith.mulf %25, %12 : vector<1x32x128xf32>
    %27 = arith.addf %23, %26 : vector<1x32x128xf32>
    %c0_10 = arith.constant 0 : index
    %c3 = arith.constant 3 : index
    %28 = memref.load %arg3[%c0_10, %c3] : memref<1x4xf32, #tpu.memory_space<smem>>
    %29 = vector.broadcast %28 : f32 to vector<1x32x128xf32>
    %30 = arith.mulf %29, %16 : vector<1x32x128xf32>
    %31 = arith.addf %27, %30 : vector<1x32x128xf32>
    %c0_11 = arith.constant 0 : index
    %32 = memref.load %arg4[%c0_11] : memref<1xf32, #tpu.memory_space<smem>>
    %33 = vector.broadcast %32 : f32 to vector<1x32x128xf32>
    %34 = arith.addf %31, %33 : vector<1x32x128xf32>
    %35 = math.tanh %34 : vector<1x32x128xf32>
    %36 = vector.shape_cast %35 : vector<1x32x128xf32> to vector<1x1x32x128xf32>
    %c0_12 = arith.constant 0 : index
    %c0_13 = arith.constant 0 : index
    %c0_14 = arith.constant 0 : index
    %c0_15 = arith.constant 0 : index
    %37 = vector.load %arg5[%c0_12, %c0_13, %c0_14, %c0_15] : memref<1x1x32x128xf32, #tpu.memory_space<vmem>>, vector<1x1x32x128xf32>
    tpu.vector_store %arg5[%c0_12, %c0_13, %c0_14, %c0_15], %36 {strides = array<i32>} : memref<1x1x32x128xf32, #tpu.memory_space<vmem>>, vector<1x1x32x128xf32>,
    return
  }
  func.func @transform_0(%arg0: i32, %arg1: i32) -> (i32, i32, i32, i32) {
    %c0_i32 = arith.constant 0 : i32
    %c0_i32_0 = arith.constant 0 : i32
    %c0_i32_1 = arith.constant 0 : i32
    return %arg0, %c0_i32, %arg1, %c0_i32_0 : i32, i32, i32, i32
  }
  func.func @transform_1(%arg0: i32, %arg1: i32) -> (i32, i32) {
    %c0_i32 = arith.constant 0 : i32
    %c0_i32_0 = arith.constant 0 : i32
    %c0_i32_1 = arith.constant 0 : i32
    return %c0_i32, %c0_i32_0 : i32, i32
  }
  func.func @transform_2(%arg0: i32, %arg1: i32) -> i32 {
    %c0_i32 = arith.constant 0 : i32
    %c0_i32_0 = arith.constant 0 : i32
    return %c0_i32 : i32
  }
  func.func @transform_3(%arg0: i32, %arg1: i32) -> (i32, i32, i32, i32) {
    %c0_i32 = arith.constant 0 : i32
    %c0_i32_0 = arith.constant 0 : i32
    %c0_i32_1 = arith.constant 0 : i32
    return %arg0, %c0_i32, %arg1, %c0_i32_0 : i32, i32, i32, i32
  }
}

</mosaic_0001>

<llo_original>
// kernel: tpu_custom_call.1
$region0: #{tpu_custom_call.1}
  #allocation0 [shape = 'u32[]', space=smem, size = 0x4, offset = 0x4, fixed_abs, tag = 'smem constant byte address 0x4 - core index']
  #allocation1 [shape = 'u32[144,128]{1,0:T(1,128)}', space=vmem, size = 0x12000, scoped, tag = 'internal scratch']
  #allocation2 [shape = 'f32[1]{0:T(128)S(6)}', space=smem, size = 0x200, scoped, tag = 'scoped memory for tpu_custom_call.1']
  %s0 = inlined_call_operand.hbm [shape: f32[2,4,32,128], index: 0, kind: input, shape index: {}]
  %s1 = inlined_call_operand.vmem [shape: f32[1,4], index: 1, kind: input, shape index: {}]
  %s2 = inlined_call_operand.<no memory space> [shape: f32[1], index: 2, kind: input, shape index: {}]
  %s3 = inlined_call_operand.hbm [shape: f32[2,1,32,128], index: 3, kind: output, shape index: {}]
  %s4 = sld [smem:[#allocation0]]
  $region53: #{tpu_custom_call.1} parent=0
    _
  %s6 = ssub.s32 1, %s4
  %s7 = scalar_select 0, %s6, %s4
  %8 = sst [smem:[#allocation2]] %s2
  $region1: #{tpu_custom_call.1} parent=0
    #allocation3 [shape = 'u8[131072]{0}', space=vmem, size = 0x20000, scoped, tag = 'input window, operand 0']
    #allocation4 [shape = 's32[2]{0}', space=sflag, size = 0x8, scoped, tag = 'scoped memory for tpu_custom_call.1']
    #allocation5 [shape = 's32[2]{0}', space=sflag, size = 0x8, scoped, tag = 'scoped memory for tpu_custom_call.1']
    #allocation6 [shape = 's32[2]{0}', space=sflag, size = 0x8, scoped, tag = 'scoped memory for tpu_custom_call.1']
    #allocation7 [shape = 'u8[512]{0}', space=smem, size = 0x200, scoped, tag = 'input window, operand 1, single buffered']
    #allocation8 [shape = 'u8[32768]{0}', space=vmem, size = 0x8000, scoped, tag = 'output window, operand 0']
    %9 = vsyncpa [#allocation4], 0
    %s10 = scalar_lea.sflag [#allocation4], 1
    %11 = vsyncpa %s10, 0
    %12 = vsyncpa [#allocation6], 0
    %13 = vsyncpa [#allocation5], 0
    %s14 = scalar_lea.sflag [#allocation5], 1
    %15 = vsyncpa %s14, 0
    loop: start=0, step=1, limit=4
    $region2: #{tpu_custom_call.1} parent=1 // loop_pre_header
      _
    $region3: #{tpu_custom_call.1} parent=1 // loop_header
      %s17 = sphi 0, %s21
      %p18 = scmp.ge.s32.totalorder %s17, 4
      %s24 = sphi 0, %s36
      %s25 = sphi 0, %s32
      %s26 = sphi 0, %s24
      %s27 = sphi 0, %s25
      %s28 = sphi 0, %s26
      %s29 = sphi 0, %s27
      %s41 = sphi 0, %s43
      %s44 = sphi 0, %s41
      %s45 = sphi 0, %s44
      %s61 = sphi 0, %s45
      %s65 = sphi 0, %s65
      %s67 = sphi 0, %s65
      %s68 = sphi 0, %s67
      %s82 = sphi 0, %s68
      %s86 = sphi 0, %s86
      %s88 = sphi 0, %s86
      %s89 = sphi 0, %s88
      %s103 = sphi 0, %s89
      %s111 = sphi 0, %s113
      %s114 = sphi 0, %s111
      %s115 = sphi 0, %s114
      %s131 = sphi 0, %s115
    $region4: #{tpu_custom_call.1} parent=1 // loop_header_branch
      %20 = sbr.rel (%p18) target = $region8
    $region5: #{tpu_custom_call.1} parent=1 // loop_body
      %s22 = ssub.s32 %s17, 1
      %s23 = ssub.s32 %s17, 2
      %s30 = sadd.s32 1, %s25
      %p31 = scmp.ge.s32.totalorder %s30, 1
      %s32 = scalar_select %p31, 0, %s30
      %s33 = sadd.s32 1, %s24
      %s34 = scalar_select %p31, %s33, %s24
      %p35 = scmp.ge.s32.totalorder %s34, 2
      %s36 = scalar_select %p35, 0, %s34
      %s37 = ssub.s32 %s24, %s36
      %s38 = ssub.s32 %s25, %s32
      %s39 = sor.u32 %s37, %s38
      %p40 = scmp.eq.s32.totalorder %s39, 0
      %s42 = sadd.s32 %s41, 1
      %s43 = scalar_select %p40, %s41, %s42
      %p46 = pneg %p40
      %p47 = scmp.eq.s32.totalorder %s17, 1
      %p48 = por %p46, %p47
      %p49 = scmp.ne.s32.totalorder %s41, %s44
      %p50 = scmp.eq.s32.totalorder %s17, 0
      %p51 = por %p49, %p50
      %p52 = scmp.ne.s32.totalorder %s41, %s44
      %p53 = scmp.eq.s32.totalorder %s22, 1
      %p54 = por %p52, %p53
      %p55 = scmp.ne.s32.totalorder %s44, %s45
      %p56 = scmp.eq.s32.totalorder %s22, 0
      %p57 = por %p55, %p56
      %p58 = scmp.ne.s32.totalorder %s44, %s45
      %p59 = scmp.eq.s32.totalorder %s23, 1
      %p60 = por %p58, %p59
      %p62 = scmp.ne.s32.totalorder %s45, %s61
      %p63 = scmp.eq.s32.totalorder %s23, 0
      %p64 = por %p62, %p63
      %s66 = sadd.s32 %s65, 1
      %p69 = scmp.eq.s32.totalorder %s17, 1
      %p70 = scmp.ne.s32.totalorder %s65, %s67
      %p71 = scmp.eq.s32.totalorder %s17, 0
      %p72 = por %p70, %p71
      %p73 = scmp.ne.s32.totalorder %s65, %s67
      %p74 = scmp.eq.s32.totalorder %s22, 1
      %p75 = por %p73, %p74
      %p76 = scmp.ne.s32.totalorder %s67, %s68
      %p77 = scmp.eq.s32.totalorder %s22, 0
      %p78 = por %p76, %p77
      %p79 = scmp.ne.s32.totalorder %s67, %s68
      %p80 = scmp.eq.s32.totalorder %s23, 1
      %p81 = por %p79, %p80
      %p83 = scmp.ne.s32.totalorder %s68, %s82
      %p84 = scmp.eq.s32.totalorder %s23, 0
      %p85 = por %p83, %p84
      %s87 = sadd.s32 %s86, 1
      %p90 = scmp.eq.s32.totalorder %s17, 1
      %p91 = scmp.ne.s32.totalorder %s86, %s88
      %p92 = scmp.eq.s32.totalorder %s17, 0
      %p93 = por %p91, %p92
      %p94 = scmp.ne.s32.totalorder %s86, %s88
      %p95 = scmp.eq.s32.totalorder %s22, 1
      %p96 = por %p94, %p95
      %p97 = scmp.ne.s32.totalorder %s88, %s89
      %p98 = scmp.eq.s32.totalorder %s22, 0
      %p99 = por %p97, %p98
      %p100 = scmp.ne.s32.totalorder %s88, %s89
      %p101 = scmp.eq.s32.totalorder %s23, 1
      %p102 = por %p100, %p101
      %p104 = scmp.ne.s32.totalorder %s89, %s103
      %p105 = scmp.eq.s32.totalorder %s23, 0
      %p106 = por %p104, %p105
      %s107 = ssub.s32 %s24, %s36
      %s108 = ssub.s32 %s25, %s32
      %s109 = sor.u32 %s107, %s108
      %p110 = scmp.eq.s32.totalorder %s109, 0
      %s112 = sadd.s32 %s111, 1
      %s113 = scalar_select %p110, %s111, %s112
      %p116 = pneg %p110
      %p117 = scmp.eq.s32.totalorder %s17, 1
      %p118 = por %p116, %p117
      %p119 = scmp.ne.s32.totalorder %s111, %s114
      %p120 = scmp.eq.s32.totalorder %s17, 0
      %p121 = por %p119, %p120
      %p122 = scmp.ne.s32.totalorder %s111, %s114
      %p123 = scmp.eq.s32.totalorder %s22, 1
      %p124 = por %p122, %p123
      %p125 = scmp.ne.s32.totalorder %s114, %s115
      %p126 = scmp.eq.s32.totalorder %s22, 0
      %p127 = por %p125, %p126
      %p128 = scmp.ne.s32.totalorder %s114, %s115
      %p129 = scmp.eq.s32.totalorder %s23, 1
      %p130 = por %p128, %p129
      %p132 = scmp.ne.s32.totalorder %s115, %s131
      %p133 = scmp.eq.s32.totalorder %s23, 0
      %p134 = por %p132, %p133
      %p135 = scmp.le.s32.totalorder 1, %s17
      %p136 = scmp.lt.s32.totalorder %s17, 3
      %p137 = pnand %p135, %p136
      %p138 = pneg %p137
      // Predicated region
      $region9: #{tpu_custom_call.1} parent=5 // pred_check
        _
      $region10: #{tpu_custom_call.1} parent=5 // pred_check_branch
        %140 = sbr.rel (%p137) target = $region12
      $region11: #{tpu_custom_call.1} parent=5 // pred_region
        %s141 = ssub.s32 %s17, 1
        // Predicated region
        $region13: #{tpu_custom_call.1} parent=11 // pred_check
          %p142 = pneg %p78
        $region14: #{tpu_custom_call.1} parent=11 // pred_check_branch
          %144 = sbr.rel (%p142) target = $region16
        $region15: #{tpu_custom_call.1} parent=11 // pred_region
          %s146 = ssub.s32 16, 16
          %147 = vsyncadd [#allocation6], %s146
          %s149 = sshll.u32 %s1, 4
          %s150 = int_to_ptr.vmem [resolvable:$true] %s149
          %152 = dma.vmem_to_smem %s150, 16, [#allocation7], [#allocation6]
        $region16: #{tpu_custom_call.1} parent=11 // pred_fallthru
          _
        // Predicated region
        $region17: #{tpu_custom_call.1} parent=11 // pred_check
          %p153 = pneg %p99
        $region18: #{tpu_custom_call.1} parent=11 // pred_check_branch
          %155 = sbr.rel (%p153) target = $region20
        $region19: #{tpu_custom_call.1} parent=11 // pred_region
          _
        $region20: #{tpu_custom_call.1} parent=11 // pred_fallthru
          _
      $region12: #{tpu_custom_call.1} parent=5 // pred_fallthru
        _
      %p156 = scmp.lt.s32.totalorder %s17, 2
      // Predicated region
      $region21: #{tpu_custom_call.1} parent=5 // pred_check
        %p157 = pneg %p156
      $region22: #{tpu_custom_call.1} parent=5 // pred_check_branch
        %159 = sbr.rel (%p157) target = $region24
      $region23: #{tpu_custom_call.1} parent=5 // pred_region
        // Predicated region
        $region25: #{tpu_custom_call.1} parent=23 // pred_check
          %p160 = pneg %p51
        $region26: #{tpu_custom_call.1} parent=23 // pred_check_branch
          %162 = sbr.rel (%p160) target = $region28
        $region27: #{tpu_custom_call.1} parent=23 // pred_region
          %s163 = sand.u32 %s41, 1
          %s164 = scalar_lea.sflag [#allocation4], %s163
          %s165 = sand.u32 %s41, 1
          %s166 = smul.addr %s165, 128
          %s167 = scalar_lea.vmem [#allocation3], %s166
          %s168 = smul.u32 4, %s25
          %s170 = ssub.s32 2048, 2048
          %171 = vsyncadd %s164, %s170
          %s172 = smul.addr %s24, 16
          %s173 = sadd.s32 %s168, %s172
          %s174 = smul.addr %s173, 128
          %s175 = scalar_lea.hbm %s0, %s174
          %s176 = sshll.u32 %s167, 4
          %s177 = int_to_ptr.vmem [resolvable:$true] %s176
          %182 = dma.hbm_to_vmem [thread:$0]  %s175, 2048, %s177, %s164, 128, 128, 8
        $region28: #{tpu_custom_call.1} parent=23 // pred_fallthru
          _
      $region24: #{tpu_custom_call.1} parent=5 // pred_fallthru
        _
      %p183 = scmp.le.s32.totalorder 1, %s17
      %p184 = scmp.lt.s32.totalorder %s17, 3
      %p185 = pnand %p183, %p184
      %p186 = pneg %p185
      // Predicated region
      $region29: #{tpu_custom_call.1} parent=5 // pred_check
        _
      $region30: #{tpu_custom_call.1} parent=5 // pred_check_branch
        %188 = sbr.rel (%p185) target = $region32
      $region31: #{tpu_custom_call.1} parent=5 // pred_region
        %s189 = ssub.s32 %s17, 1
        %s190 = sand.u32 %s44, 1
        %s191 = scalar_lea.sflag [#allocation4], %s190
        %s192 = sand.u32 %s44, 1
        %s193 = smul.addr %s192, 128
        %s194 = scalar_lea.vmem [#allocation3], %s193
        // Predicated region
        $region33: #{tpu_custom_call.1} parent=31 // pred_check
          %p195 = pneg %p57
        $region34: #{tpu_custom_call.1} parent=31 // pred_check_branch
          %197 = sbr.rel (%p195) target = $region36
        $region35: #{tpu_custom_call.1} parent=31 // pred_region
          %198 = dma.done %s191, 2048
        $region36: #{tpu_custom_call.1} parent=31 // pred_fallthru
          _
        // Predicated region
        $region37: #{tpu_custom_call.1} parent=31 // pred_check
          %p199 = pneg %p78
        $region38: #{tpu_custom_call.1} parent=31 // pred_check_branch
          %201 = sbr.rel (%p199) target = $region40
        $region39: #{tpu_custom_call.1} parent=31 // pred_region
          %202 = dma.done [#allocation6], 16
        $region40: #{tpu_custom_call.1} parent=31 // pred_fallthru
          _
        %203 = sfence
        %s204 = sand.u32 %s44, 1
        %s205 = scalar_lea.sflag [#allocation4], %s204
        %s206 = sand.u32 %s44, 1
        %s207 = smul.addr %s206, 128
        %s208 = scalar_lea.vmem [#allocation3], %s207
        %p209 = pneg %p57
        %p210 = pneg %p54
        %p211 = pneg %p78
        %p212 = pneg %p75
        %p213 = pneg %p99
        %p214 = pneg %p96
        %p215 = pneg %p127
        %p216 = pneg %p124
        %s217 = sand.u32 %s114, 1
        %s218 = scalar_lea.sflag [#allocation5], %s217
        %s219 = sand.u32 %s114, 1
        %s220 = smul.addr %s219, 32
        %s221 = scalar_lea.vmem [#allocation8], %s220
        %s222 = smul.u32 4, %s27
        %s223 = smul.u32 4, %s27
        %v224 = vld [vmem:[%s194] sm:$0xff]
        %v225 = vld [vmem:[%s194 + $0x8] sm:$0xff]
        %v226 = vld [vmem:[%s194 + $0x10] sm:$0xff]
        %v227 = vld [vmem:[%s194 + $0x18] sm:$0xff]
        %v228 = vld [vmem:[%s194 + $0x20] sm:$0xff]
        %v229 = vld [vmem:[%s194 + $0x28] sm:$0xff]
        %v230 = vld [vmem:[%s194 + $0x30] sm:$0xff]
        %v231 = vld [vmem:[%s194 + $0x38] sm:$0xff]
        %v232 = vld [vmem:[%s194 + $0x40] sm:$0xff]
        %v233 = vld [vmem:[%s194 + $0x48] sm:$0xff]
        %v234 = vld [vmem:[%s194 + $0x50] sm:$0xff]
        %v235 = vld [vmem:[%s194 + $0x58] sm:$0xff]
        %v236 = vld [vmem:[%s194 + $0x60] sm:$0xff]
        %v237 = vld [vmem:[%s194 + $0x68] sm:$0xff]
        %v238 = vld [vmem:[%s194 + $0x70] sm:$0xff]
        %v239 = vld [vmem:[%s194 + $0x78] sm:$0xff]
        %v240 = vmax.f32 %v224, 0.0
        %v241 = vmax.f32 %v225, 0.0
        %v242 = vmax.f32 %v226, 0.0
        %v243 = vmax.f32 %v227, 0.0
        %v244 = vmax.f32 %v228, 0.0
        %v245 = vmax.f32 %v229, 0.0
        %v246 = vmax.f32 %v230, 0.0
        %v247 = vmax.f32 %v231, 0.0
        %v248 = vmax.f32 %v232, 0.0
        %v249 = vmax.f32 %v233, 0.0
        %v250 = vmax.f32 %v234, 0.0
        %v251 = vmax.f32 %v235, 0.0
        %v252 = vmax.f32 %v236, 0.0
        %v253 = vmax.f32 %v237, 0.0
        %v254 = vmax.f32 %v238, 0.0
        %v255 = vmax.f32 %v239, 0.0
        %s256 = sld [smem:[#allocation7]]
        %v257 = vstv %s256
        %v258 = vmul.f32 %v257, %v240
        %v259 = vmul.f32 %v257, %v241
        %v260 = vmul.f32 %v257, %v242
        %v261 = vmul.f32 %v257, %v243
        %s262 = sld [smem:[#allocation7 + $0x1]]
        %v263 = vstv %s262
        %v264 = vmul.f32 %v263, %v244
        %v265 = vmul.f32 %v263, %v245
        %v266 = vmul.f32 %v263, %v246
        %v267 = vmul.f32 %v263, %v247
        %v268 = vadd.f32 %v258, %v264
        %v269 = vadd.f32 %v259, %v265
        %v270 = vadd.f32 %v260, %v266
        %v271 = vadd.f32 %v261, %v267
        %s272 = sld [smem:[#allocation7 + $0x2]]
        %v273 = vstv %s272
        %v274 = vmul.f32 %v273, %v248
        %v275 = vmul.f32 %v273, %v249
        %v276 = vmul.f32 %v273, %v250
        %v277 = vmul.f32 %v273, %v251
        %v278 = vadd.f32 %v268, %v274
        %v279 = vadd.f32 %v269, %v275
        %v280 = vadd.f32 %v270, %v276
        %v281 = vadd.f32 %v271, %v277
        %s282 = sld [smem:[#allocation7 + $0x3]]
        %v283 = vstv %s282
        %v284 = vmul.f32 %v283, %v252
        %v285 = vmul.f32 %v283, %v253
        %v286 = vmul.f32 %v283, %v254
        %v287 = vmul.f32 %v283, %v255
        %v288 = vadd.f32 %v278, %v284
        %v289 = vadd.f32 %v279, %v285
        %v290 = vadd.f32 %v280, %v286
        %v291 = vadd.f32 %v281, %v287
        %s292 = sld [smem:[#allocation2]]
        %v293 = vstv %s292
        %v294 = vadd.f32 %v288, %v293
        %v295 = vadd.f32 %v289, %v293
        %v296 = vadd.f32 %v290, %v293
        %v297 = vadd.f32 %v291, %v293
        %v298 = vtanh.pop %v294
        %v299 = vtanh.pop %v295
        %v300 = vtanh.pop %v296
        %v301 = vtanh.pop %v297
        %302 = vst [vmem:[%s221] sm:$0xff] %v298
        %303 = vst [vmem:[%s221 + $0x8] sm:$0xff] %v299
        %304 = vst [vmem:[%s221 + $0x10] sm:$0xff] %v300
        %305 = vst [vmem:[%s221 + $0x18] sm:$0xff] %v301
        %s306 = sand.u32 %s114, 1
        %s307 = scalar_lea.sflag [#allocation5], %s306
        %s308 = sand.u32 %s114, 1
        %s309 = smul.addr %s308, 32
        %s310 = scalar_lea.vmem [#allocation8], %s309
        // Predicated region
        $region41: #{tpu_custom_call.1} parent=31 // pred_check
          %p311 = pneg %p124
        $region42: #{tpu_custom_call.1} parent=31 // pred_check_branch
          %313 = sbr.rel (%p311) target = $region44
        $region43: #{tpu_custom_call.1} parent=31 // pred_region
          %s314 = smul.u32 4, %s27
          %s316 = ssub.s32 512, 512
          %317 = vsyncadd %s307, %s316
          %s318 = smul.addr %s26, 4
          %s319 = sadd.s32 %s314, %s318
          %s320 = smul.addr %s319, 128
          %s321 = scalar_lea.hbm %s3, %s320
          %s322 = sshll.u32 %s310, 4
          %s323 = int_to_ptr.vmem [resolvable:$true] %s322
          %328 = dma.vmem_to_hbm [thread:$0]  %s323, 512, %s321, %s307, 128, 128, 8
        $region44: #{tpu_custom_call.1} parent=31 // pred_fallthru
          _
      $region32: #{tpu_custom_call.1} parent=5 // pred_fallthru
        _
      %p329 = scmp.le.s32.totalorder 2, %s17
      // Predicated region
      $region45: #{tpu_custom_call.1} parent=5 // pred_check
        %p330 = pneg %p329
      $region46: #{tpu_custom_call.1} parent=5 // pred_check_branch
        %332 = sbr.rel (%p330) target = $region48
      $region47: #{tpu_custom_call.1} parent=5 // pred_region
        %s333 = ssub.s32 %s17, 2
        // Predicated region
        $region49: #{tpu_custom_call.1} parent=47 // pred_check
          %p334 = pneg %p130
        $region50: #{tpu_custom_call.1} parent=47 // pred_check_branch
          %336 = sbr.rel (%p334) target = $region52
        $region51: #{tpu_custom_call.1} parent=47 // pred_region
          %s337 = sand.u32 %s115, 1
          %s338 = scalar_lea.sflag [#allocation5], %s337
          %s339 = sand.u32 %s115, 1
          %s340 = smul.addr %s339, 32
          %s341 = scalar_lea.vmem [#allocation8], %s340
          %342 = dma.done %s338, 512
        $region52: #{tpu_custom_call.1} parent=47 // pred_fallthru
          _
      $region48: #{tpu_custom_call.1} parent=5 // pred_fallthru
        _
    $region6: #{tpu_custom_call.1} parent=1 // loop_footer
      %s21 = sadd.s32 1, %s17
    $region7: #{tpu_custom_call.1} parent=1 // loop_footer_branch
      %16 = sbr.rel target = $region3
    $region8: #{tpu_custom_call.1} parent=1 // loop_exit
      _
    %343 = vsyncpa [#allocation4], 1
    %s344 = scalar_lea.sflag [#allocation4], 1
    %345 = vsyncpa %s344, 1
    %346 = vsyncpa [#allocation5], 1
    %s347 = scalar_lea.sflag [#allocation5], 1
    %348 = vsyncpa %s347, 1
    %349 = vsyncpa [#allocation6], 1
    %s350 = scalar_lea.sflag [#allocation6], 1
    %351 = vsyncpa %s350, 1

</llo_original>
